<compile_context>
chip_gen: v6e
topology: v6e:2x2x1
jax: 0.10.0
libtpu: 0.0.40
codegen_flags: <defaults>
</compile_context>

<pallas_src>
import functools

import jax
import jax.numpy as jnp
from jax import lax
from jax.experimental import pallas as pl
from jax.experimental.pallas import tpu as pltpu

IGNORE_INDEX = 255
_SUB = 512     # lanes per inner LSE chain (bounds vreg / VMEM-temporary pressure)
_LANE = 128


def _round_up(x, m):
    return (x + m - 1) // m * m


def _ce_loss_kernel(logits_ref, tgt_ref, sum_out_ref, cnt_out_ref,
                    sum_acc, cnt_acc, *, hw, ignore_index, tiles_per_chunk,
                    tile_p, sub):
    chunk = pl.program_id(1)
    j = pl.program_id(2)

    @pl.when(j == 0)
    def _init():
        sum_acc[...] = jnp.zeros_like(sum_acc)
        cnt_acc[...] = jnp.zeros_like(cnt_acc)

    # First pixel (flattened H*W index) covered by this block.
    base = (chunk * tiles_per_chunk + j) * tile_p

    def _process(off, width):
        """LSE + NLL for `width` lane-contiguous pixels starting at block offset `off`."""
        x = logits_ref[0, :, pl.ds(off, width)].astype(jnp.float32)   # (C, width)
        t = tgt_ref[0, :, pl.ds(off, width)]                          # (1, width) int32

        # Numerically stable log-sum-exp over the class (sublane) axis.
        m = jnp.max(x, axis=0, keepdims=True)                              # (1, width)
        lse = m + jnp.log(jnp.sum(jnp.exp(x - m), axis=0, keepdims=True))  # (1, width)

        # Gather x[target] via one-hot compare (no dynamic gather on TPU).
        cls = lax.broadcasted_iota(jnp.int32, x.shape, 0)                  # (C, width)
        x_t = jnp.sum(jnp.where(cls == t, x, 0.0), axis=0, keepdims=True)  # (1, width)

        # Mask only the per-pixel results; SELECT (not multiply) so NaN/Inf
        # garbage read in the padded tail of the last block cannot propagate.
        p_idx = base + off + lax.broadcasted_iota(jnp.int32, (1, width), 1)
        valid = jnp.logical_and(t != ignore_index, p_idx < hw)             # (1, width)

        sum_acc[:, pl.ds(off, width)] += jnp.where(valid, lse - x_t, 0.0)
        cnt_acc[:, pl.ds(off, width)] += jnp.where(valid, 1.0, 0.0)

    n_full = tile_p // sub
    tail = tile_p - n_full * sub
    if n_full == 1 and tail == 0:
        # Whole tile in one chain (small-tile / full-HW case) — static offset.
        _process(0, sub)
    else:
        def body(i, carry):
            _process(pl.multiple_of(i * sub, sub), sub)
            return carry
        lax.fori_loop(0, n_full, body, 0, unroll=(n_full <= 8))
        if tail > 0:
            _process(n_full * sub, tail)

    @pl.when(j == pl.num_programs(2) - 1)
    def _finalize():
        # Single cross-lane reduction per (image, chunk), broadcast into the
        # lane-dense (1,1,1,128) output block; wrapper picks lane 0.
        s = jnp.sum(sum_acc[...])
        c = jnp.sum(cnt_acc[...])
        sum_out_ref[...] = jnp.full(sum_out_ref.shape, s, dtype=jnp.float32)
        cnt_out_ref[...] = jnp.full(cnt_out_ref.shape, c, dtype=jnp.float32)


@functools.partial(jax.jit, static_argnames=("ignore_index",))
def cross_entropy_loss_2d(logits, targets, ignore_index=IGNORE_INDEX):
    """logits: (N, C, H, W) float; targets: (N, H, W) int. Returns scalar f32."""
    N, C, H, W = logits.shape
    HW = H * W

    # Free reshapes — no transpose, no pad, source dtype DMA'd as-is.
    x = logits.reshape(N, C, HW)
    t = targets.reshape(N, 1, HW).astype(jnp.int32)

    itemsize = jnp.dtype(logits.dtype).itemsize
    sublane_mult = {4: 8, 2: 16, 1: 32}.get(itemsize, 8)
    c_pad = _round_up(C, sublane_mult)          # sublane-padded class count

    # VMEM budget for the lane-proportional working set (bigger on the
    # 128-MiB-VMEM parts v5e/v6e; conservative on v7x's 64 MiB).
    try:
        vmem_cap = pltpu.get_tpu_info().vmem_capacity_bytes
    except Exception:  # pragma: no cover - conservative fallback
        vmem_cap = 64 * 1024 * 1024
    budget = (24 if vmem_cap >= 100 * 1024 * 1024 else 12) * 1024 * 1024

    # Per-lane VMEM bytes: double-buffered logits (sublane-padded C) +
    # double-buffered int32 targets (1 row pads to 8 sublanes) +
    # two f32 accumulator scratch rows (each pads to 8 sublanes).
    bytes_per_lane = 2 * c_pad * itemsize + 2 * 8 * 4 + 2 * 8 * 4
    tile_p = budget // bytes_per_lane
    tile_p = max(_LANE, (tile_p // _LANE) * _LANE)
    if tile_p >= _SUB:
        tile_p = (tile_p // _SUB) * _SUB
    tile_p = min(tile_p, 65536)
    # TODO(synk): class-axis tiling / online-LSE path for very large C; the
    # 128-lane floor above can exceed the budget, we just raise the VMEM limit.

    if HW <= tile_p:
        tile_p = HW                              # full pixel axis in one block
    n_ptiles = pl.cdiv(HW, tile_p)

    # Parallel pixel-chunk axis so megacore (v7x: 2 TCs) is used when N is small.
    n_chunks = 2 if n_ptiles >= 2 else 1
    tiles_per_chunk = pl.cdiv(n_ptiles, n_chunks)
    last_block = n_ptiles - 1

    sub = min(_SUB, tile_p)
    kernel = functools.partial(
        _ce_loss_kernel, hw=HW, ignore_index=ignore_index,
        tiles_per_chunk=tiles_per_chunk, tile_p=tile_p, sub=sub)

    def in_map(n, c, j):
        # Clamp redundant trailing tiles of the last chunk to the final real
        # block; their pixels are >= HW so the in-kernel mask zeroes them.
        return (n, 0, jnp.minimum(c * tiles_per_chunk + j, last_block))

    # Estimated VMEM use (sublane-padded), used to set the scoped limit.
    est_vmem = (2 * c_pad * tile_p * itemsize      # logits double-buffer
                + 2 * 8 * tile_p * 4               # targets double-buffer
                + 2 * 8 * tile_p * 4               # accumulator scratch
                + 4 * 8 * 128 * 4                  # output blocks
                + 2 * 1024 * 1024)                 # headroom
    vmem_limit = int(min(max(32 * 1024 * 1024, est_vmem), 120 * 1024 * 1024))

    cost = pl.CostEstimate(
        flops=6 * N * C * HW,
        transcendentals=N * (C + 1) * HW,
        bytes_accessed=N * C * HW * itemsize + N * HW * 4,
    )

    sum_out, cnt_out = pl.pallas_call(
        kernel,
        out_shape=(
            jax.ShapeDtypeStruct((N, n_chunks, 1, 128), jnp.float32),
            jax.ShapeDtypeStruct((N, n_chunks, 1, 128), jnp.float32),
        ),
        grid_spec=pltpu.PrefetchScalarGridSpec(
            num_scalar_prefetch=0,
            grid=(N, n_chunks, tiles_per_chunk),
            in_specs=[
                pl.BlockSpec((1, C, tile_p), in_map),
                pl.BlockSpec((1, 1, tile_p), in_map),
            ],
            out_specs=[
                pl.BlockSpec((1, 1, 1, 128), lambda n, c, j: (n, c, 0, 0)),
                pl.BlockSpec((1, 1, 1, 128), lambda n, c, j: (n, c, 0, 0)),
            ],
            scratch_shapes=[
                pltpu.VMEM((1, tile_p), jnp.float32),  # running per-lane loss sum
                pltpu.VMEM((1, tile_p), jnp.float32),  # running per-lane valid count
            ],
        ),
        compiler_params=pltpu.CompilerParams(
            # Batch & pixel-chunk axes parallel (megacore); the pixel-tile axis
            # carries the accumulator, so it stays "arbitrary".
            dimension_semantics=("parallel", "parallel", "arbitrary"),
            vmem_limit_bytes=vmem_limit,
        ),
        cost_estimate=cost,
    )(x, t)

    # Tiny final reduction over per-(image, chunk) partials (0/0 -> NaN matches
    # torch when every pixel is ignored).
    total = jnp.sum(sum_out[:, :, 0, 0])
    count = jnp.sum(cnt_out[:, :, 0, 0])
    # TODO(synk): per-class `weight=` of nn.NLLLoss not implemented (module default is None).
    return total / count


def _reference(logits, targets, ignore_index=IGNORE_INDEX):
    """Pure-JAX reference matching F.log_softmax + nn.NLLLoss(mean, ignore_index)."""
    N, C, H, W = logits.shape
    x = jnp.transpose(logits, (0, 2, 3, 1)).reshape(-1, C).astype(jnp.float32)
    t = targets.reshape(-1)
    logp = jax.nn.log_softmax(x, axis=-1)
    valid = t != ignore_index
    safe_t = jnp.where(valid, t, 0)
    picked = jnp.take_along_axis(logp, safe_t[:, None], axis=-1)[:, 0]
    loss = jnp.where(valid, -picked, 0.0)
    return jnp.sum(loss) / jnp.sum(valid.astype(jnp.float32))


if __name__ == "__main__":
    key = jax.random.PRNGKey(0)
    k1, k2, k3 = jax.random.split(key, 3)

    N, C, H, W = 2, 4, 16, 16
    logits = jax.random.normal(k1, (N, C, H, W), dtype=jnp.float32)
    targets = jax.random.randint(k2, (N, H, W), 0, C, dtype=jnp.int32)
    # sprinkle some ignore_index pixels to exercise masking
    ignore_mask = jax.random.bernoulli(k3, 0.1, (N, H, W))
    targets = jnp.where(ignore_mask, IGNORE_INDEX, targets)

    loss = cross_entropy_loss_2d(logits, targets)
    jax.block_until_ready(loss)

    ref = _reference(logits, targets)
    assert jnp.allclose(loss, ref, atol=1e-5, rtol=1e-5), (loss, ref)

    print("KERNEL_OK")
</pallas_src>

<mosaic_0001>
module attributes {stable_mosaic.version = 11 : i64} {
  func.func @_ce_loss_kernel(%arg0: i32, %arg1: i32, %arg2: i32, %arg3: memref<1x4x256xf32, #tpu.memory_space<vmem>>, %arg4: memref<1x1x256xi32, #tpu.memory_space<vmem>>, %arg5: memref<1x1x1x128xf32, #tpu.memory_space<vmem>>, %arg6: memref<1x1x1x128xf32, #tpu.memory_space<vmem>>, %arg7: memref<1x256xf32, #tpu.memory_space<vmem>>, %arg8: memref<1x256xf32, #tpu.memory_space<vmem>>) attributes {dimension_semantics = [#tpu.dimension_semantics<parallel>, #tpu.dimension_semantics<parallel>, #tpu.dimension_semantics<arbitrary>], iteration_bounds = array<i64: 2, 1, 1>, scalar_prefetch = 0 : i64, scratch_operands = 2 : i64, tpu.core_type = #tpu.core_type<tc>, window_params = [{transform_indices = @transform_0, window_bounds = array<i64: 1, 4, 256>}, {transform_indices = @transform_1, window_bounds = array<i64: 1, 1, 256>}, {transform_indices = @transform_2, window_bounds = array<i64: 1, 1, 1, 128>}, {transform_indices = @transform_3, window_bounds = array<i64: 1, 1, 1, 128>}]} {
    %c0_i32 = arith.constant 0 : i32
    %0 = arith.cmpi eq, %arg2, %c0_i32 : i32
    %1 = arith.extui %0 : i1 to i32
    %c0_i32_0 = arith.constant 0 : i32
    %2 = arith.cmpi ne, %1, %c0_i32_0 : i32
    scf.if %2 {
      %cst_24 = arith.constant 0.000000e+00 : f32
      %50 = vector.broadcast %cst_24 : f32 to vector<1x256xf32>
      %c0_25 = arith.constant 0 : index
      %c0_26 = arith.constant 0 : index
      %51 = vector.load %arg7[%c0_25, %c0_26] : memref<1x256xf32, #tpu.memory_space<vmem>>, vector<1x256xf32>
      tpu.vector_store %arg7[%c0_25, %c0_26], %50 {strides = array<i32>} : memref<1x256xf32, #tpu.memory_space<vmem>>, vector<1x256xf32>,
      %cst_27 = arith.constant 0.000000e+00 : f32
      %52 = vector.broadcast %cst_27 : f32 to vector<1x256xf32>
      %c0_28 = arith.constant 0 : index
      %c0_29 = arith.constant 0 : index
      %53 = vector.load %arg8[%c0_28, %c0_29] : memref<1x256xf32, #tpu.memory_space<vmem>>, vector<1x256xf32>
      tpu.vector_store %arg8[%c0_28, %c0_29], %52 {strides = array<i32>} : memref<1x256xf32, #tpu.memory_space<vmem>>, vector<1x256xf32>,
    } else {
    }
    %c1_i32 = arith.constant 1 : i32
    %3 = arith.muli %arg1, %c1_i32 : i32
    %4 = arith.addi %3, %arg2 : i32
    %c256_i32 = arith.constant 256 : i32
    %5 = arith.muli %4, %c256_i32 : i32
    %c0 = arith.constant 0 : index
    %c0_1 = arith.constant 0 : index
    %c0_2 = arith.constant 0 : index
    %6 = vector.load %arg3[%c0, %c0_1, %c0_2] : memref<1x4x256xf32, #tpu.memory_space<vmem>>, vector<1x4x256xf32>
    %7 = vector.shape_cast %6 : vector<1x4x256xf32> to vector<4x256xf32>
    %c0_3 = arith.constant 0 : index
    %c0_4 = arith.constant 0 : index
    %c0_5 = arith.constant 0 : index
    %8 = vector.load %arg4[%c0_3, %c0_4, %c0_5] : memref<1x1x256xi32, #tpu.memory_space<vmem>>, vector<1x1x256xi32>
    %9 = vector.shape_cast %8 : vector<1x1x256xi32> to vector<1x256xi32>
    %cst = arith.constant dense<0xFF800000> : vector<256xf32>
    %10 = vector.multi_reduction <maximumf>, %7, %cst [0] : vector<4x256xf32> to vector<256xf32>
    %11 = vector.shape_cast %10 : vector<256xf32> to vector<1x256xf32>
    %12 = vector.broadcast %11 : vector<1x256xf32> to vector<4x256xf32>
    %13 = arith.subf %7, %12 : vector<4x256xf32>
    %14 = math.exp %13 : vector<4x256xf32>
    %cst_6 = arith.constant dense<0.000000e+00> : vector<256xf32>
    %15 = vector.multi_reduction <add>, %14, %cst_6 [0] : vector<4x256xf32> to vector<256xf32>
    %16 = vector.shape_cast %15 : vector<256xf32> to vector<1x256xf32>
    %17 = math.log %16 : vector<1x256xf32>
    %18 = arith.addf %11, %17 : vector<1x256xf32>
    %19 = tpu.iota {dimensions = array<i32: 0>} : vector<4x256xi32>
    %20 = vector.broadcast %9 : vector<1x256xi32> to vector<4x256xi32>
    %21 = arith.cmpi eq, %19, %20 : vector<4x256xi32>
    %cst_7 = arith.constant 0.000000e+00 : f32
    %22 = vector.broadcast %cst_7 : f32 to vector<4x256xf32>
    %23 = arith.select %21, %7, %22 : vector<4x256xi1>, vector<4x256xf32>
    %cst_8 = arith.constant dense<0.000000e+00> : vector<256xf32>
    %24 = vector.multi_reduction <add>, %23, %cst_8 [0] : vector<4x256xf32> to vector<256xf32>
    %25 = vector.shape_cast %24 : vector<256xf32> to vector<1x256xf32>
    %c0_i32_9 = arith.constant 0 : i32
    %26 = arith.addi %5, %c0_i32_9 : i32
    %27 = tpu.iota {dimensions = array<i32: 1>} : vector<1x256xi32>
    %28 = vector.broadcast %26 : i32 to vector<1x256xi32>
    %29 = arith.addi %28, %27 : vector<1x256xi32>
    %c255_i32 = arith.constant 255 : i32
    %30 = vector.broadcast %c255_i32 : i32 to vector<1x256xi32>
    %31 = arith.cmpi ne, %9, %30 : vector<1x256xi32>
    %c256_i32_10 = arith.constant 256 : i32
    %32 = vector.broadcast %c256_i32_10 : i32 to vector<1x256xi32>
    %33 = arith.cmpi slt, %29, %32 : vector<1x256xi32>
    %34 = arith.andi %31, %33 : vector<1x256xi1>
    %c0_11 = arith.constant 0 : index
    %c0_12 = arith.constant 0 : index
    %35 = vector.load %arg7[%c0_11, %c0_12] : memref<1x256xf32, #tpu.memory_space<vmem>>, vector<1x256xf32>
    %36 = arith.subf %18, %25 : vector<1x256xf32>
    %cst_13 = arith.constant 0.000000e+00 : f32
    %37 = vector.broadcast %cst_13 : f32 to vector<1x256xf32>
    %38 = arith.select %34, %36, %37 : vector<1x256xi1>, vector<1x256xf32>
    %39 = arith.addf %35, %38 : vector<1x256xf32>
    %c0_14 = arith.constant 0 : index
    %c0_15 = arith.constant 0 : index
    %40 = vector.load %arg7[%c0_14, %c0_15] : memref<1x256xf32, #tpu.memory_space<vmem>>, vector<1x256xf32>
    tpu.vector_store %arg7[%c0_14, %c0_15], %39 {strides = array<i32>} : memref<1x256xf32, #tpu.memory_space<vmem>>, vector<1x256xf32>,
    %c0_16 = arith.constant 0 : index
    %c0_17 = arith.constant 0 : index
    %41 = vector.load %arg8[%c0_16, %c0_17] : memref<1x256xf32, #tpu.memory_space<vmem>>, vector<1x256xf32>
    %cst_18 = arith.constant 1.000000e+00 : f32
    %cst_19 = arith.constant 0.000000e+00 : f32
    %42 = vector.broadcast %cst_18 : f32 to vector<1x256xf32>
    %43 = vector.broadcast %cst_19 : f32 to vector<1x256xf32>
    %44 = arith.select %34, %42, %43 : vector<1x256xi1>, vector<1x256xf32>
    %45 = arith.addf %41, %44 : vector<1x256xf32>
    %c0_20 = arith.constant 0 : index
    %c0_21 = arith.constant 0 : index
    %46 = vector.load %arg8[%c0_20, %c0_21] : memref<1x256xf32, #tpu.memory_space<vmem>>, vector<1x256xf32>
    tpu.vector_store %arg8[%c0_20, %c0_21], %45 {strides = array<i32>} : memref<1x256xf32, #tpu.memory_space<vmem>>, vector<1x256xf32>,
    %c0_i32_22 = arith.constant 0 : i32
    %47 = arith.cmpi eq, %arg2, %c0_i32_22 : i32
    %48 = arith.extui %47 : i1 to i32
    %c0_i32_23 = arith.constant 0 : i32
    %49 = arith.cmpi ne, %48, %c0_i32_23 : i32
    scf.if %49 {
      %c0_24 = arith.constant 0 : index
      %c0_25 = arith.constant 0 : index
      %50 = vector.load %arg7[%c0_24, %c0_25] : memref<1x256xf32, #tpu.memory_space<vmem>>, vector<1x256xf32>
      %51 = vector.shape_cast %50 : vector<1x256xf32> to vector<1x1x256xf32>
      %cst_26 = arith.constant dense<0.000000e+00> : vector<1xf32>
      %52 = vector.multi_reduction <add>, %51, %cst_26 [1, 2] : vector<1x1x256xf32> to vector<1xf32>
      %53 = vector.shape_cast %52 : vector<1xf32> to vector<1x1x1xf32>
      %54 = vector.extract %53[0, 0, 0] : f32 from vector<1x1x1xf32>
      %c0_27 = arith.constant 0 : index
      %c0_28 = arith.constant 0 : index
      %55 = vector.load %arg8[%c0_27, %c0_28] : memref<1x256xf32, #tpu.memory_space<vmem>>, vector<1x256xf32>
      %56 = vector.shape_cast %55 : vector<1x256xf32> to vector<1x1x256xf32>
      %cst_29 = arith.constant dense<0.000000e+00> : vector<1xf32>
      %57 = vector.multi_reduction <add>, %56, %cst_29 [1, 2] : vector<1x1x256xf32> to vector<1xf32>
      %58 = vector.shape_cast %57 : vector<1xf32> to vector<1x1x1xf32>
      %59 = vector.extract %58[0, 0, 0] : f32 from vector<1x1x1xf32>
      %60 = vector.broadcast %54 : f32 to vector<1x1x1x128xf32>
      %c0_30 = arith.constant 0 : index
      %c0_31 = arith.constant 0 : index
      %c0_32 = arith.constant 0 : index
      %c0_33 = arith.constant 0 : index
      %61 = vector.load %arg5[%c0_30, %c0_31, %c0_32, %c0_33] : memref<1x1x1x128xf32, #tpu.memory_space<vmem>>, vector<1x1x1x128xf32>
      tpu.vector_store %arg5[%c0_30, %c0_31, %c0_32, %c0_33], %60 {strides = array<i32>} : memref<1x1x1x128xf32, #tpu.memory_space<vmem>>, vector<1x1x1x128xf32>,
      %62 = vector.broadcast %59 : f32 to vector<1x1x1x128xf32>
      %c0_34 = arith.constant 0 : index
      %c0_35 = arith.constant 0 : index
      %c0_36 = arith.constant 0 : index
      %c0_37 = arith.constant 0 : index
      %63 = vector.load %arg6[%c0_34, %c0_35, %c0_36, %c0_37] : memref<1x1x1x128xf32, #tpu.memory_space<vmem>>, vector<1x1x1x128xf32>
      tpu.vector_store %arg6[%c0_34, %c0_35, %c0_36, %c0_37], %62 {strides = array<i32>} : memref<1x1x1x128xf32, #tpu.memory_space<vmem>>, vector<1x1x1x128xf32>,
    } else {
    }
    return
  }
  func.func @transform_0(%arg0: i32, %arg1: i32, %arg2: i32) -> (i32, i32, i32) {
    %c1_i32 = arith.constant 1 : i32
    %0 = arith.muli %arg1, %c1_i32 : i32
    %1 = arith.addi %0, %arg2 : i32
    %c0_i32 = arith.constant 0 : i32
    %2 = arith.minsi %1, %c0_i32 : i32
    %c0_i32_0 = arith.constant 0 : i32
    %c0_i32_1 = arith.constant 0 : i32
    return %arg0, %c0_i32_0, %2 : i32, i32, i32
  }
  func.func @transform_1(%arg0: i32, %arg1: i32, %arg2: i32) -> (i32, i32, i32) {
    %c1_i32 = arith.constant 1 : i32
    %0 = arith.muli %arg1, %c1_i32 : i32
    %1 = arith.addi %0, %arg2 : i32
    %c0_i32 = arith.constant 0 : i32
    %2 = arith.minsi %1, %c0_i32 : i32
    %c0_i32_0 = arith.constant 0 : i32
    %c0_i32_1 = arith.constant 0 : i32
    return %arg0, %c0_i32_0, %2 : i32, i32, i32
  }
  func.func @transform_2(%arg0: i32, %arg1: i32, %arg2: i32) -> (i32, i32, i32, i32) {
    %c0_i32 = arith.constant 0 : i32
    %c0_i32_0 = arith.constant 0 : i32
    %c0_i32_1 = arith.constant 0 : i32
    return %arg0, %arg1, %c0_i32, %c0_i32_0 : i32, i32, i32, i32
  }
  func.func @transform_3(%arg0: i32, %arg1: i32, %arg2: i32) -> (i32, i32, i32, i32) {
    %c0_i32 = arith.constant 0 : i32
    %c0_i32_0 = arith.constant 0 : i32
    %c0_i32_1 = arith.constant 0 : i32
    return %arg0, %arg1, %c0_i32, %c0_i32_0 : i32, i32, i32, i32
  }
}

</mosaic_0001>

<llo_original>
// kernel: cross_entropy_loss_2d.1
$region0: #{cross_entropy_loss_2d.1}
  #allocation0 [shape = 'u32[]', space=smem, size = 0x4, offset = 0x4, fixed_abs, tag = 'smem constant byte address 0x4 - core index']
  #allocation1 [shape = 'u32[144,128]{1,0:T(1,128)}', space=vmem, size = 0x12000, scoped, tag = 'internal scratch']
  #allocation2 [shape = 'f32[1,256]{1,0:T(1,128)}', space=vmem, size = 0x400, scoped, tag = 'scratch operand']
  #allocation3 [shape = 'f32[1,256]{1,0:T(1,128)}', space=vmem, size = 0x400, scoped, tag = 'scratch operand']
  %s0 = inlined_call_operand.vmem [shape: f32[2,4,256], index: 0, kind: input, shape index: {}]
  %s1 = inlined_call_operand.vmem [shape: s32[2,1,256], index: 1, kind: input, shape index: {}]
  %s2 = inlined_call_operand.vmem [shape: f32[2,1,1,128], index: 2, kind: output, shape index: {0}]
  %s3 = inlined_call_operand.vmem [shape: f32[2,1,1,128], index: 3, kind: output, shape index: {1}]
  %4 = xla_tuple %s2, %s3
  %s5 = sld [smem:[#allocation0]]
  $region57: #{cross_entropy_loss_2d.1} parent=0
    _
  %s7 = ssub.s32 1, %s5
  %s8 = scalar_select 0, %s7, %s5
  loop: start=0, step=1, limit=4
  $region2: #{cross_entropy_loss_2d.1} parent=0 // loop_pre_header
    _
  $region3: #{cross_entropy_loss_2d.1} parent=0 // loop_header
    %s10 = sphi 0, %s14
    %p11 = scmp.ge.s32.totalorder %s10, 4
    %s17 = sphi 0, %s36
    %s18 = sphi 0, %s32
    %s19 = sphi 0, %s28
    %s20 = sphi 0, %s17
    %s21 = sphi 0, %s18
    %s22 = sphi 0, %s19
    %s23 = sphi 0, %s20
    %s24 = sphi 0, %s21
    %s25 = sphi 0, %s22
    %s47 = sphi 0, %s49
    %s50 = sphi 0, %s47
    %s51 = sphi 0, %s50
    %s67 = sphi 0, %s51
    %s81 = sphi 0, %s83
    %s84 = sphi 0, %s81
    %s85 = sphi 0, %s84
    %s101 = sphi 0, %s85
    %s109 = sphi 0, %s111
    %s112 = sphi 0, %s109
    %s113 = sphi 0, %s112
    %s129 = sphi 0, %s113
    %s137 = sphi 0, %s139
    %s140 = sphi 0, %s137
    %s141 = sphi 0, %s140
    %s157 = sphi 0, %s141
  $region4: #{cross_entropy_loss_2d.1} parent=0 // loop_header_branch
    %13 = sbr.rel (%p11) target = $region8
  $region5: #{cross_entropy_loss_2d.1} parent=0 // loop_body
    %s15 = ssub.s32 %s10, 1
    %s16 = ssub.s32 %s10, 2
    %s26 = sadd.s32 1, %s19
    %p27 = scmp.ge.s32.totalorder %s26, 1
    %s28 = scalar_select %p27, 0, %s26
    %s29 = sadd.s32 1, %s18
    %s30 = scalar_select %p27, %s29, %s18
    %p31 = scmp.ge.s32.totalorder %s30, 1
    %s32 = scalar_select %p31, 0, %s30
    %s33 = sadd.s32 1, %s17
    %s34 = scalar_select %p31, %s33, %s17
    %p35 = scmp.ge.s32.totalorder %s34, 2
    %s36 = scalar_select %p35, 0, %s34
    %s37 = sadd.s32 %s18, %s19
    %p38 = scmp.lt.s32.totalorder %s37, 0
    %s39 = scalar_select %p38, %s37, 0
    %s40 = sadd.s32 %s32, %s28
    %p41 = scmp.lt.s32.totalorder %s40, 0
    %s42 = scalar_select %p41, %s40, 0
    %s43 = ssub.s32 %s17, %s36
    %s44 = ssub.s32 %s39, %s42
    %s45 = sor.u32 %s43, %s44
    %p46 = scmp.eq.s32.totalorder %s45, 0
    %s48 = sadd.s32 %s47, 1
    %s49 = scalar_select %p46, %s47, %s48
    %p52 = pneg %p46
    %p53 = scmp.eq.s32.totalorder %s10, 1
    %p54 = por %p52, %p53
    %p55 = scmp.ne.s32.totalorder %s47, %s50
    %p56 = scmp.eq.s32.totalorder %s10, 0
    %p57 = por %p55, %p56
    %p58 = scmp.ne.s32.totalorder %s47, %s50
    %p59 = scmp.eq.s32.totalorder %s15, 1
    %p60 = por %p58, %p59
    %p61 = scmp.ne.s32.totalorder %s50, %s51
    %p62 = scmp.eq.s32.totalorder %s15, 0
    %p63 = por %p61, %p62
    %p64 = scmp.ne.s32.totalorder %s50, %s51
    %p65 = scmp.eq.s32.totalorder %s16, 1
    %p66 = por %p64, %p65
    %p68 = scmp.ne.s32.totalorder %s51, %s67
    %p69 = scmp.eq.s32.totalorder %s16, 0
    %p70 = por %p68, %p69
    %s71 = sadd.s32 %s18, %s19
    %p72 = scmp.lt.s32.totalorder %s71, 0
    %s73 = scalar_select %p72, %s71, 0
    %s74 = sadd.s32 %s32, %s28
    %p75 = scmp.lt.s32.totalorder %s74, 0
    %s76 = scalar_select %p75, %s74, 0
    %s77 = ssub.s32 %s17, %s36
    %s78 = ssub.s32 %s73, %s76
    %s79 = sor.u32 %s77, %s78
    %p80 = scmp.eq.s32.totalorder %s79, 0
    %s82 = sadd.s32 %s81, 1
    %s83 = scalar_select %p80, %s81, %s82
    %p86 = pneg %p80
    %p87 = scmp.eq.s32.totalorder %s10, 1
    %p88 = por %p86, %p87
    %p89 = scmp.ne.s32.totalorder %s81, %s84
    %p90 = scmp.eq.s32.totalorder %s10, 0
    %p91 = por %p89, %p90
    %p92 = scmp.ne.s32.totalorder %s81, %s84
    %p93 = scmp.eq.s32.totalorder %s15, 1
    %p94 = por %p92, %p93
    %p95 = scmp.ne.s32.totalorder %s84, %s85
    %p96 = scmp.eq.s32.totalorder %s15, 0
    %p97 = por %p95, %p96
    %p98 = scmp.ne.s32.totalorder %s84, %s85
    %p99 = scmp.eq.s32.totalorder %s16, 1
    %p100 = por %p98, %p99
    %p102 = scmp.ne.s32.totalorder %s85, %s101
    %p103 = scmp.eq.s32.totalorder %s16, 0
    %p104 = por %p102, %p103
    %s105 = ssub.s32 %s17, %s36
    %s106 = ssub.s32 %s18, %s32
    %s107 = sor.u32 %s105, %s106
    %p108 = scmp.eq.s32.totalorder %s107, 0
    %s110 = sadd.s32 %s109, 1
    %s111 = scalar_select %p108, %s109, %s110
    %p114 = pneg %p108
    %p115 = scmp.eq.s32.totalorder %s10, 1
    %p116 = por %p114, %p115
    %p117 = scmp.ne.s32.totalorder %s109, %s112
    %p118 = scmp.eq.s32.totalorder %s10, 0
    %p119 = por %p117, %p118
    %p120 = scmp.ne.s32.totalorder %s109, %s112
    %p121 = scmp.eq.s32.totalorder %s15, 1
    %p122 = por %p120, %p121
    %p123 = scmp.ne.s32.totalorder %s112, %s113
    %p124 = scmp.eq.s32.totalorder %s15, 0
    %p125 = por %p123, %p124
    %p126 = scmp.ne.s32.totalorder %s112, %s113
    %p127 = scmp.eq.s32.totalorder %s16, 1
    %p128 = por %p126, %p127
    %p130 = scmp.ne.s32.totalorder %s113, %s129
    %p131 = scmp.eq.s32.totalorder %s16, 0
    %p132 = por %p130, %p131
    %s133 = ssub.s32 %s17, %s36
    %s134 = ssub.s32 %s18, %s32
    %s135 = sor.u32 %s133, %s134
    %p136 = scmp.eq.s32.totalorder %s135, 0
    %s138 = sadd.s32 %s137, 1
    %s139 = scalar_select %p136, %s137, %s138
    %p142 = pneg %p136
    %p143 = scmp.eq.s32.totalorder %s10, 1
    %p144 = por %p142, %p143
    %p145 = scmp.ne.s32.totalorder %s137, %s140
    %p146 = scmp.eq.s32.totalorder %s10, 0
    %p147 = por %p145, %p146
    %p148 = scmp.ne.s32.totalorder %s137, %s140
    %p149 = scmp.eq.s32.totalorder %s15, 1
    %p150 = por %p148, %p149
    %p151 = scmp.ne.s32.totalorder %s140, %s141
    %p152 = scmp.eq.s32.totalorder %s15, 0
    %p153 = por %p151, %p152
    %p154 = scmp.ne.s32.totalorder %s140, %s141
    %p155 = scmp.eq.s32.totalorder %s16, 1
    %p156 = por %p154, %p155
    %p158 = scmp.ne.s32.totalorder %s141, %s157
    %p159 = scmp.eq.s32.totalorder %s16, 0
    %p160 = por %p158, %p159
    %p161 = scmp.le.s32.totalorder 1, %s10
    %p162 = scmp.lt.s32.totalorder %s10, 3
    %p163 = pnand %p161, %p162
    %p164 = pneg %p163
    // Predicated region
    $region9: #{cross_entropy_loss_2d.1} parent=5 // pred_check
      _
    $region10: #{cross_entropy_loss_2d.1} parent=5 // pred_check_branch
      %166 = sbr.rel (%p163) target = $region12
    $region11: #{cross_entropy_loss_2d.1} parent=5 // pred_region
      %s167 = ssub.s32 %s10, 1
    $region12: #{cross_entropy_loss_2d.1} parent=5 // pred_fallthru
      _
    %p168 = scmp.lt.s32.totalorder %s10, 2
    // Predicated region
    $region13: #{cross_entropy_loss_2d.1} parent=5 // pred_check
      %p169 = pneg %p168
    $region14: #{cross_entropy_loss_2d.1} parent=5 // pred_check_branch
      %171 = sbr.rel (%p169) target = $region16
    $region15: #{cross_entropy_loss_2d.1} parent=5 // pred_region
      // Predicated region
      $region17: #{cross_entropy_loss_2d.1} parent=15 // pred_check
        %p172 = pneg %p57
      $region18: #{cross_entropy_loss_2d.1} parent=15 // pred_check_branch
        %174 = sbr.rel (%p172) target = $region20
      $region19: #{cross_entropy_loss_2d.1} parent=15 // pred_region
        %s175 = sadd.s32 %s18, %s19
        %p176 = scmp.lt.s32.totalorder %s175, 0
        %s177 = scalar_select %p176, %s175, 0
        %s178 = smul.u32 2, %s177
        %p179 = scmp.lt.s32.totalorder %s17, 1
        %s180 = scalar_select %p179, %s17, 1
        %p181 = scmp.lt.s32.totalorder %s178, 1
        %s182 = scalar_select %p181, %s178, 1
        %s183 = smul.addr %s180, 2
        %s184 = sadd.s32 %s182, %s183
        %s185 = smul.addr %s184, 4
        %s186 = scalar_lea.vmem %s0, %s185
        %s187 = sadd.s32 %s18, %s19
        %p188 = scmp.lt.s32.totalorder %s187, 0
        %s189 = scalar_select %p188, %s187, 0
        %s190 = smul.u32 2, %s189
      $region20: #{cross_entropy_loss_2d.1} parent=15 // pred_fallthru
        _
      // Predicated region
      $region21: #{cross_entropy_loss_2d.1} parent=15 // pred_check
        %p191 = pneg %p91
      $region22: #{cross_entropy_loss_2d.1} parent=15 // pred_check_branch
        %193 = sbr.rel (%p191) target = $region24
      $region23: #{cross_entropy_loss_2d.1} parent=15 // pred_region
        %s194 = sadd.s32 %s18, %s19
        %p195 = scmp.lt.s32.totalorder %s194, 0
        %s196 = scalar_select %p195, %s194, 0
        %s197 = smul.u32 2, %s196
        %p198 = scmp.lt.s32.totalorder %s17, 1
        %s199 = scalar_select %p198, %s17, 1
        %p200 = scmp.lt.s32.totalorder %s197, 1
        %s201 = scalar_select %p200, %s197, 1
        %s202 = smul.addr %s199, 2
        %s203 = sadd.s32 %s201, %s202
        %s204 = scalar_lea.vmem %s1, %s203
        %s205 = sadd.s32 %s18, %s19
        %p206 = scmp.lt.s32.totalorder %s205, 0
        %s207 = scalar_select %p206, %s205, 0
        %s208 = smul.u32 2, %s207
      $region24: #{cross_entropy_loss_2d.1} parent=15 // pred_fallthru
        _
    $region16: #{cross_entropy_loss_2d.1} parent=5 // pred_fallthru
      _
    %p209 = scmp.le.s32.totalorder 1, %s10
    %p210 = scmp.lt.s32.totalorder %s10, 3
    %p211 = pnand %p209, %p210
    %p212 = pneg %p211
    // Predicated region
    $region25: #{cross_entropy_loss_2d.1} parent=5 // pred_check
      _
    $region26: #{cross_entropy_loss_2d.1} parent=5 // pred_check_branch
      %214 = sbr.rel (%p211) target = $region28
    $region27: #{cross_entropy_loss_2d.1} parent=5 // pred_region
      %s215 = ssub.s32 %s10, 1
      %s216 = sadd.s32 %s21, %s22
      %p217 = scmp.lt.s32.totalorder %s216, 0
      %s218 = scalar_select %p217, %s216, 0
      %s219 = smul.u32 2, %s218
      %p220 = scmp.lt.s32.totalorder %s20, 1
      %s221 = scalar_select %p220, %s20, 1
      %p222 = scmp.lt.s32.totalorder %s219, 1
      %s223 = scalar_select %p222, %s219, 1
      %s224 = smul.addr %s221, 2
      %s225 = sadd.s32 %s223, %s224
      %s226 = smul.addr %s225, 4
      %s227 = scalar_lea.vmem %s0, %s226
      %p228 = pneg %p63
      %p229 = pneg %p60
      %s230 = sadd.s32 %s21, %s22
      %p231 = scmp.lt.s32.totalorder %s230, 0
      %s232 = scalar_select %p231, %s230, 0
      %s233 = smul.u32 2, %s232
      %p234 = scmp.lt.s32.totalorder %s20, 1
      %s235 = scalar_select %p234, %s20, 1
      %p236 = scmp.lt.s32.totalorder %s233, 1
      %s237 = scalar_select %p236, %s233, 1
      %s238 = smul.addr %s235, 2
      %s239 = sadd.s32 %s237, %s238
      %s240 = scalar_lea.vmem %s1, %s239
      %p241 = pneg %p97
      %p242 = pneg %p94
      %p243 = pneg %p125
      %p244 = pneg %p122
      %p245 = scmp.lt.s32.totalorder %s20, 1
      %s246 = scalar_select %p245, %s20, 1
      %p247 = scmp.lt.s32.totalorder %s21, 0
      %s248 = scalar_select %p247, %s21, 0
      %s249 = sadd.s32 %s248, %s246
      %s250 = scalar_lea.vmem %s2, %s249
      %p251 = pneg %p153
      %p252 = pneg %p150
      %p253 = scmp.lt.s32.totalorder %s20, 1
      %s254 = scalar_select %p253, %s20, 1
      %p255 = scmp.lt.s32.totalorder %s21, 0
      %s256 = scalar_select %p255, %s21, 0
      %s257 = sadd.s32 %s256, %s254
      %s258 = scalar_lea.vmem %s3, %s257
      %s259 = sadd.s32 %s21, %s22
      %p260 = scmp.lt.s32.totalorder %s259, 0
      %s261 = scalar_select %p260, %s259, 0
      %s262 = smul.u32 2, %s261
      %p263 = scmp.lt.s32.totalorder %s20, 1
      %s264 = scalar_select %p263, %s20, 1
      %p265 = scmp.lt.s32.totalorder %s262, 1
      %s266 = scalar_select %p265, %s262, 1
      %s267 = smul.addr %s264, 2
      %s268 = sadd.s32 %s266, %s267
      %s269 = smul.addr %s268, 4
      %s270 = scalar_lea.vmem %s0, %s269
      %s271 = sadd.s32 %s21, %s22
      %p272 = scmp.lt.s32.totalorder %s271, 0
      %s273 = scalar_select %p272, %s271, 0
      %s274 = smul.u32 2, %s273
      %s275 = sadd.s32 %s21, %s22
      %p276 = scmp.lt.s32.totalorder %s275, 0
      %s277 = scalar_select %p276, %s275, 0
      %s278 = smul.u32 2, %s277
      %p279 = scmp.lt.s32.totalorder %s20, 1
      %s280 = scalar_select %p279, %s20, 1
      %p281 = scmp.lt.s32.totalorder %s278, 1
      %s282 = scalar_select %p281, %s278, 1
      %s283 = smul.addr %s280, 2
      %s284 = sadd.s32 %s282, %s283
      %s285 = scalar_lea.vmem %s1, %s284
      %s286 = sadd.s32 %s21, %s22
      %p287 = scmp.lt.s32.totalorder %s286, 0
      %s288 = scalar_select %p287, %s286, 0
      %s289 = smul.u32 2, %s288
      %p290 = scmp.lt.s32.totalorder %s20, 1
      %s291 = scalar_select %p290, %s20, 1
      %p292 = scmp.lt.s32.totalorder %s21, 0
      %s293 = scalar_select %p292, %s21, 0
      %s294 = sadd.s32 %s293, %s291
      %s295 = scalar_lea.vmem %s2, %s294
      %p296 = scmp.lt.s32.totalorder %s20, 1
      %s297 = scalar_select %p296, %s20, 1
      %p298 = scmp.lt.s32.totalorder %s21, 0
      %s299 = scalar_select %p298, %s21, 0
      %s300 = sadd.s32 %s299, %s297
      %s301 = scalar_lea.vmem %s3, %s300
      %p302 = scmp.eq.s32.totalorder %s22, 0
      // Predicated region
      $region29: #{cross_entropy_loss_2d.1} parent=27 // pred_check
        %p303 = pneg %p302
      $region30: #{cross_entropy_loss_2d.1} parent=27 // pred_check_branch
        %305 = sbr.rel (%p303) target = $region32
      $region31: #{cross_entropy_loss_2d.1} parent=27 // pred_region
        %v306 = vlaneseq
        %vm307 = vcmp.ge.s32.totalorder %v306, 0
        %vm308 = vcmp.lt.s32.totalorder %v306, 256
        %vm309 = vmand %vm307, %vm308
        %310 = vst.msk [vmem:[#allocation2] sm:$0x3] %vm309, 0.0
        %311 = vst.msk [vmem:[#allocation3] sm:$0x3] %vm309, 0.0
      $region32: #{cross_entropy_loss_2d.1} parent=27 // pred_fallthru
        _
      %s312 = sadd.s32 %s21, %s22
      %s313 = smul.u32 %s312, 256
      %v314 = vld [vmem:[%s270] sm:$0xff]
      %v315 = vld [vmem:[%s285] sm:$0x3]
      %v317 = vcombine.high %v314, %v314
      %vm319 = vcmask 1043456
      %v320 = vsel %vm319, %v314, -inf
      %v321 = vrot.slane %v320, 4
      %v322 = vmax.f32 %v320, %v321
      %v323 = vrot.slane %v322, 2
      %v324 = vmax.f32 %v322, %v323
      %v325 = vrot.slane %v324, 1
      %v326 = vmax.f32 %v324, %v325
      %v327 = vsel %vm319, %v317, -inf
      %v328 = vrot.slane %v327, 4
      %v329 = vmax.f32 %v327, %v328
      %v330 = vrot.slane %v329, 2
      %v331 = vmax.f32 %v329, %v330
      %v332 = vrot.slane %v331, 1
      %v333 = vmax.f32 %v331, %v332
      %v336 = vcombine.low %v326, %v333
      %v338 = vsub.f32 %v314, %v336
      %v339 = vmul.f32 %v338, 1.442695
      %v340 = vpow.pop %v339
      %v342 = vcombine.high %v340, %v340
      %v344 = vsel %vm319, %v340, 0.0
      %v345 = vrot.slane %v344, 4
      %v346 = vadd.f32 %v344, %v345
      %v347 = vrot.slane %v346, 2
      %v348 = vadd.f32 %v346, %v347
      %v349 = vrot.slane %v348, 1
      %v350 = vadd.f32 %v348, %v349
      %v351 = vsel %vm319, %v342, 0.0
      %v352 = vrot.slane %v351, 4
      %v353 = vadd.f32 %v351, %v352
      %v354 = vrot.slane %v353, 2
      %v355 = vadd.f32 %v353, %v354
      %v356 = vrot.slane %v355, 1
      %v357 = vadd.f32 %v355, %v356
      %v358 = vlog2.pop %v350
      %v359 = vmul.f32 %v358, 0.6931472
      %v360 = vlog2.pop %v357
      %v361 = vmul.f32 %v360, 0.6931472
      %v362 = vadd.f32 %v326, %v359
      %v363 = vadd.f32 %v333, %v361
      %v364 = vlaneseq
      %v365 = vshrl.u32 %v364, 7
      %v366 = vlaneseq
      %v367 = vshrl.u32 %v366, 7
      %v368 = vsub.s32 0, %v367
      %v369 = vrot.slane %v315, %v368
      %v370 = vlaneseq
      %v371 = vshrl.u32 %v370, 7
      %v372 = vsub.s32 1, %v371
      %v373 = vrot.slane %v315, %v372
      %vm374 = vcmp.eq.s32.totalorder %v365, %v369
      %vm375 = vcmp.eq.s32.totalorder %v365, %v373
      %v376 = vsel %vm374, %v314, 0.0
      %v377 = vsel %vm375, %v317, 0.0
      %v378 = vsel %vm319, %v376, 0.0
      %v379 = vrot.slane %v378, 4
      %v380 = vadd.f32 %v378, %v379
      %v381 = vrot.slane %v380, 2
      %v382 = vadd.f32 %v380, %v381
      %v383 = vrot.slane %v382, 1
      %v384 = vadd.f32 %v382, %v383
      %v385 = vsel %vm319, %v377, 0.0
      %v386 = vrot.slane %v385, 4
      %v387 = vadd.f32 %v385, %v386
      %v388 = vrot.slane %v387, 2
      %v389 = vadd.f32 %v387, %v388
      %v390 = vrot.slane %v389, 1
      %v391 = vadd.f32 %v389, %v390
      %v392 = vlaneseq
      %v393 = vand.u32 %v392, 127
      %v394 = vadd.s32 %v393, 128
      %v395 = vstv %s313
      %v396 = vadd.s32 %v395, %v393
      %v397 = vadd.s32 %v395, %v394
      %vm398 = vcmp.ne.s32.totalorder %v315, 255
      %vm399 = vcmp.lt.s32.totalorder %v396, 256
      %vm400 = vcmp.lt.s32.totalorder %v397, 256
      %v401 = vsel %vm399, 1, 0
      %v402 = vsel %vm400, 1, 0
      %v403 = vcombine.low %v401, %v402
      %v405 = vunpack.c.l.s4 1966171168
      %v406 = vunpack.c.0.s8 %v405
      %v407 = vlaneseq
      %v408 = vshrl.u32 %v407, 7
      %v409 = vsub.s32 %v406, %v408
      %v410 = vrot.slane %v403, %v409
      %v412 = vunpack.c.l.s4 1966171168
      %v413 = vunpack.c.0.s8 %v412
      %v414 = vlaneseq
      %v415 = vshrl.u32 %v414, 7
      %v416 = vsub.s32 %v413, %v415
      %v417 = vrot.slane %v410, %v416
      %vm418 = vcmp.ne.s32.totalorder %v417, 0
      %vm419 = vmand %vm398, %vm418
      %v420 = vld [vmem:[#allocation2] sm:$0x3]
      %v421 = vsub.f32 %v362, %v384
      %v422 = vsub.f32 %v363, %v391
      %v425 = vcombine.low %v421, %v422
      %v427 = vunpack.c.l.s4 1966171168
      %v428 = vunpack.c.0.s8 %v427
      %v429 = vlaneseq
      %v430 = vshrl.u32 %v429, 7
      %v431 = vsub.s32 %v428, %v430
      %v432 = vrot.slane %v425, %v431
      %v434 = vunpack.c.l.s4 1966171168
      %v435 = vunpack.c.0.s8 %v434
      %v436 = vlaneseq
      %v437 = vshrl.u32 %v436, 7
      %v438 = vsub.s32 %v435, %v437
      %v439 = vrot.slane %v432, %v438
      %v441 = vsel %vm419, %v439, 0.0
      %v442 = vadd.f32 %v420, %v441
      %v443 = vlaneseq
      %vm444 = vcmp.ge.s32.totalorder %v443, 0
      %vm445 = vcmp.lt.s32.totalorder %v443, 256
      %vm446 = vmand %vm444, %vm445
      %447 = vst.msk [vmem:[#allocation2] sm:$0x3] %vm446, %v442
      %v448 = vld [vmem:[#allocation3] sm:$0x3]
      %v449 = vsel %vm419, 1.0, 0.0
      %v450 = vadd.f32 %v448, %v449
      %451 = vst.msk [vmem:[#allocation3] sm:$0x3] %vm446, %v450
      // Predicated region
      $region33: #{cross_entropy_loss_2d.1} parent=27 // pred_check
        %p452 = pneg %p302
      $region34: #{cross_entropy_loss_2d.1} parent=27 // pred_check_branch
        %454 = sbr.rel (%p452) target = $region36
      $region35: #{cross_entropy_loss_2d.1} parent=27 // pred_region
        %v455 = vld [vmem:[#allocation2] sm:$0x3]
        %v457 = vlaneseq
        %v458 = vshrl.u32 %v457, 7
        %v459 = vsub.s32 0, %v458
        %v460 = vrot.slane %v455, %v459
        %v461 = vlaneseq
        %v462 = vshrl.u32 %v461, 7
        %v463 = vsub.s32 1, %v462
        %v464 = vrot.slane %v455, %v463
        %vm467 = vcmask 1040384
        %v468 = vsel %vm467, %v460, 0.0
        %v469 = vsel %vm467, %v464, 0.0
        %v470 = vadd.f32 %v468, %v469
        %471 = vadd.xlane.f32.xlu0 %v470
        %v472 = vpop.xlane.xlu0 %471
        %v473 = vrot.slane %v472, 4
        %v474 = vadd.f32 %v472, %v473
        %v475 = vrot.slane %v474, 2
        %v476 = vadd.f32 %v474, %v475
        %v477 = vrot.slane %v476, 1
        %v478 = vadd.f32 %v476, %v477
        %s479 = vtos %v478
        %v480 = vld [vmem:[#allocation3] sm:$0x3]
        %v482 = vlaneseq
        %v483 = vshrl.u32 %v482, 7
        %v484 = vsub.s32 0, %v483
        %v485 = vrot.slane %v480, %v484
        %v486 = vlaneseq
        %v487 = vshrl.u32 %v486, 7
        %v488 = vsub.s32 1, %v487
        %v489 = vrot.slane %v480, %v488
        %v492 = vsel %vm467, %v485, 0.0
        %v493 = vsel %vm467, %v489, 0.0
        %v494 = vadd.f32 %v492, %v493
        %495 = vadd.xlane.f32.xlu0 %v494
        %v496 = vpop.xlane.xlu0 %495
        %v497 = vrot.slane %v496, 4
        %v498 = vadd.f32 %v496, %v497
        %v499 = vrot.slane %v498, 2
        %v500 = vadd.f32 %v498, %v499
        %v501 = vrot.slane %v500, 1
        %v502 = vadd.f32 %v500, %v501
        %s503 = vtos %v502
        %v504 = vstv %s479
        %505 = vst [vmem:[%s295] sm:$0x1] %v504
        %v506 = vstv %s503
        %507 = vst [vmem:[%s301] sm:$0x1] %v506
      $region36: #{cross_entropy_loss_2d.1} parent=27 // pred_fallthru
        _
      %p508 = scmp.lt.s32.totalorder %s20, 1
      %s509 = scalar_select %p508, %s20, 1
      %p510 = scmp.lt.s32.totalorder %s21, 0
      %s511 = scalar_select %p510, %s21, 0
      %s512 = sadd.s32 %s511, %s509
      %s513 = scalar_lea.vmem %s2, %s512
      %p514 = scmp.lt.s32.totalorder %s20, 1
      %s515 = scalar_select %p514, %s20, 1
      %p516 = scmp.lt.s32.totalorder %s21, 0
      %s517 = scalar_select %p516, %s21, 0
      %s518 = sadd.s32 %s517, %s515
      %s519 = scalar_lea.vmem %s3, %s518
      // Predicated region
      $region37: #{cross_entropy_loss_2d.1} parent=27 // pred_check
        %p520 = pneg %p122
      $region38: #{cross_entropy_loss_2d.1} parent=27 // pred_check_branch
        %522 = sbr.rel (%p520) target = $region40
      $region39: #{cross_entropy_loss_2d.1} parent=27 // pred_region
        _
      $region40: #{cross_entropy_loss_2d.1} parent=27 // pred_fallthru
        _
      // Predicated region
      $region41: #{cross_entropy_loss_2d.1} parent=27 // pred_check
        %p523 = pneg %p150
      $region42: #{cross_entropy_loss_2d.1} parent=27 // pred_check_branch
        %525 = sbr.rel (%p523) target = $region44
      $region43: #{cross_entropy_loss_2d.1} parent=27 // pred_region
        _
      $region44: #{cross_entropy_loss_2d.1} parent=27 // pred_fallthru
        _
    $region28: #{cross_entropy_loss_2d.1} parent=5 // pred_fallthru
      _
    %p526 = scmp.le.s32.totalorder 2, %s10
    // Predicated region
    $region45: #{cross_entropy_loss_2d.1} parent=5 // pred_check
      %p527 = pneg %p526
    $region46: #{cross_entropy_loss_2d.1} parent=5 // pred_check_branch
      %529 = sbr.rel (%p527) target = $region48
    $region47: #{cross_entropy_loss_2d.1} parent=5 // pred_region
      %s530 = ssub.s32 %s10, 2
      // Predicated region
      $region49: #{cross_entropy_loss_2d.1} parent=47 // pred_check
        %p531 = pneg %p128
      $region50: #{cross_entropy_loss_2d.1} parent=47 // pred_check_branch
        %533 = sbr.rel (%p531) target = $region52
      $region51: #{cross_entropy_loss_2d.1} parent=47 // pred_region
        %p534 = scmp.lt.s32.totalorder %s23, 1
        %s535 = scalar_select %p534, %s23, 1
        %p536 = scmp.lt.s32.totalorder %s24, 0
        %s537 = scalar_select %p536, %s24, 0
        %s538 = sadd.s32 %s537, %s535
        %s539 = scalar_lea.vmem %s2, %s538
      $region52: #{cross_entropy_loss_2d.1} parent=47 // pred_fallthru
        _
      // Predicated region
      $region53: #{cross_entropy_loss_2d.1} parent=47 // pred_check
        %p540 = pneg %p156
      $region54: #{cross_entropy_loss_2d.1} parent=47 // pred_check_branch
        %542 = sbr.rel (%p540) target = $region56
      $region55: #{cross_entropy_loss_2d.1} parent=47 // pred_region
        %p543 = scmp.lt.s32.totalorder %s23, 1
        %s544 = scalar_select %p543, %s23, 1
        %p545 = scmp.lt.s32.totalorder %s24, 0
        %s546 = scalar_select %p545, %s24, 0
        %s547 = sadd.s32 %s546, %s544
        %s548 = scalar_lea.vmem %s3, %s547
      $region56: #{cross_entropy_loss_2d.1} parent=47 // pred_fallthru
        _
    $region48: #{cross_entropy_loss_2d.1} parent=5 // pred_fallthru
      _
  $region6: #{cross_entropy_loss_2d.1} parent=0 // loop_footer
    %s14 = sadd.s32 1, %s10
  $region7: #{cross_entropy_loss_2d.1} parent=0 // loop_footer_branch
    %9 = sbr.rel target = $region3
  $region8: #{cross_entropy_loss_2d.1} parent=0 // loop_exit
    _

</llo_original>
